<compile_context>
chip_gen: v7x
topology: tpu7x:2x2x1
jax: 0.10.0
libtpu: 0.0.40
codegen_flags: <defaults>
</compile_context>

<pallas_src>
import jax
import jax.numpy as jnp
from jax.experimental import pallas as pl
from jax.experimental.pallas import tpu as pltpu


def moe_kernel(x_ref, wg_ref, bg_ref, w1_ref, b1_ref, w2_ref, b2_ref,
               o_ref, acc_ref, gate_ref, gcol_ref):
    """Grid = (token_tiles, num_experts, F_tiles); accumulate over (e, f)."""
    e = pl.program_id(1)
    f = pl.program_id(2)
    last_e = pl.num_programs(1) - 1
    last_f = pl.num_programs(2) - 1

    # Once per token tile: zero the accumulator and compute the gating softmax
    # into a persistent VMEM scratch (hoisted out of the expert / F loops).
    @pl.when(jnp.logical_and(e == 0, f == 0))
    def _():
        acc_ref[...] = jnp.zeros_like(acc_ref)
        logits = jnp.dot(x_ref[...], wg_ref[...],
                         preferred_element_type=jnp.float32) + bg_ref[...]
        m = jnp.max(logits, axis=-1, keepdims=True)
        p = jnp.exp(logits - m)
        gate_ref[...] = p / jnp.sum(p, axis=-1, keepdims=True)        # (tm, E)

    # Once per expert: select this expert's gate column into a (tm, 1) scratch
    # (hoisted out of the F_tiles loop; saves the iota/where/lane-reduce work
    # on (F/tf - 1) of the steps).
    @pl.when(f == 0)
    def _():
        col = jax.lax.broadcasted_iota(jnp.int32, gate_ref.shape, 1)
        gcol_ref[...] = jnp.sum(jnp.where(col == e, gate_ref[...], 0.0),
                                axis=-1, keepdims=True)                # (tm, 1)

    # Expert e, F-chunk f:  h_f = relu(x @ W1[:, f] + b1[f]).
    # Fold the gate into h so the W2 matmul accumulates the weighted mixture
    # directly:  acc += (g * h_f) @ W2[f]   (no (tm,H) temporary, no extra
    # accumulator read-modify-write pass).
    h = jnp.dot(x_ref[...], w1_ref[...],
                preferred_element_type=jnp.float32)                    # (tm, tf)
    h = jnp.maximum(h + b1_ref[...], 0.0)
    hg = (gcol_ref[...] * h).astype(w2_ref.dtype)
    acc_ref[...] += jnp.dot(hg, w2_ref[...],
                            preferred_element_type=jnp.float32)        # (tm, H)

    # Finalize: one tiny (tm,E)x(E,H) MXU op adds all gate-weighted expert
    # biases at once (sum_e gate[:,e] * b2[e] == gate @ b2), then store.
    @pl.when(jnp.logical_and(e == last_e, f == last_f))
    def _():
        acc_ref[...] += jnp.dot(gate_ref[...], b2_ref[...],
                                preferred_element_type=jnp.float32)
        o_ref[...] = acc_ref[...].astype(o_ref.dtype)


def _pick_tile(total, cap, aligns=(256, 128, 8)):
    """Largest divisor of `total` that is <= cap, preferring coarser alignment."""
    cap = max(1, min(total, int(cap)))
    divs = [d for d in range(1, total + 1) if total % d == 0 and d <= cap]
    for a in aligns:
        aligned = [d for d in divs if d % a == 0]
        if aligned:
            return max(aligned)
    return max(divs)


def moe_forward(x, params, *, tm=None, tf=None):
    B, S, H = x.shape
    N = B * S
    wg, bg = params["wg"], params["bg"]          # (H, E), (E,)
    w1, b1 = params["w1"], params["b1"]          # (E, H, F), (E, F)
    w2, b2 = params["w2"], params["b2"]          # (E, F, H), (E, H)
    E = wg.shape[1]
    F = w1.shape[2]
    w_isz = jnp.dtype(w1.dtype).itemsize
    x_isz = jnp.dtype(x.dtype).itemsize

    # Per-core VMEM capacity (v5e/v6e: 128 MiB, v7x: 64 MiB); conservative fallback.
    num_cores = 1
    try:
        info = pltpu.get_tpu_info()
        vmem_cap = int(getattr(info, "vmem_capacity_bytes", 64 * 2**20))
        num_cores = int(getattr(info, "num_cores", 1) or 1)
    except Exception:  # pragma: no cover - CPU / interpret fallback
        vmem_cap = 64 * 2**20
    multi_core = (num_cores > 1) or (vmem_cap <= 64 * 2**20)

    budget = (vmem_cap * 3) // 4                  # usable fraction of VMEM

    # F tile: size the double-buffered W1/W2 chunks to ~40% of the budget,
    # 256-aligned (MXU-friendly on v6e/v7x; still 128-aligned on v5e).
    if tf is None:
        weight_budget = (budget * 2) // 5
        tf_cap = max(128, weight_budget // (2 * 2 * H * w_isz))   # 2 bufs x (W1+W2)
        tf = _pick_tile(F, tf_cap, aligns=(256, 128, 8))
    assert F % tf == 0, "expert hidden dim must be divisible by the F tile size"

    # Token tile: derived from H, dtypes and the remaining VMEM budget
    # (weight HBM traffic scales as 1/tm, so take the largest tm that fits).
    if tm is None:
        token_budget = budget - 2 * 2 * H * tf * w_isz            # minus weight bufs
        per_row = (2 * H * x_isz                   # x tile (double-buffered)
                   + 2 * H * x_isz                 # out tile (double-buffered)
                   + H * 4                         # f32 accumulator
                   + tf * 4                        # h intermediate
                   + 2 * 128 * 4)                  # gate / gate-column scratch (padded)
        tm_cap = max(8, token_budget // per_row)
        tm = _pick_tile(N, tm_cap, aligns=(512, 256, 128, 8))
        # On 2-TC parts keep the parallel token-tile count even so both cores work.
        if multi_core and (N // tm) % 2 != 0:
            cands = [d for d in range(max(8, tm // 2), tm + 1)
                     if N % d == 0 and (N // d) % 2 == 0]
            if cands:
                tm = max(cands)
    assert N % tm == 0, "token count must be divisible by the token tile size"

    # Accurate VMEM working-set estimate (as BlockSpecs will allocate it),
    # plus ~25% + compiler-internal-scratch headroom; never above capacity.
    need = (2 * tm * H * x_isz                          # x tile (2 bufs)
            + 2 * tm * H * x_isz                        # out tile (2 bufs)
            + 2 * (H * max(E, 128) + 8 * 128) * w_isz   # gate W / b (padded, 2 bufs)
            + 2 * (H * tf + 8 * tf) * w_isz             # W1 + b1 chunks (2 bufs)
            + 2 * (tf * H + max(E, 8) * H) * w_isz      # W2 chunk + b2 (2 bufs)
            + tm * H * 4                                # f32 accumulator
            + tm * max(E, 128) * 4                      # gate scratch (lane padded)
            + tm * 128 * 4)                             # gate-column scratch
    vmem_limit = int(min(vmem_cap, max(32 * 2**20, need + need // 4 + (8 << 20))))

    x_flat = x.reshape(N, H)
    bg2 = bg.reshape(1, E)
    b1_3 = b1.reshape(E, 1, F)

    out = pl.pallas_call(
        moe_kernel,
        out_shape=jax.ShapeDtypeStruct((N, H), x.dtype),
        grid_spec=pltpu.PrefetchScalarGridSpec(
            num_scalar_prefetch=0,
            grid=(N // tm, E, F // tf),
            in_specs=[
                pl.BlockSpec((tm, H), lambda i, e, f: (i, 0)),              # x tile
                pl.BlockSpec((H, E), lambda i, e, f: (0, 0)),               # gate W
                pl.BlockSpec((1, E), lambda i, e, f: (0, 0)),               # gate b
                pl.BlockSpec((pl.Squeezed(), H, tf),
                             lambda i, e, f: (e, 0, f)),                    # W1[e][:, f]
                pl.BlockSpec((pl.Squeezed(), 1, tf),
                             lambda i, e, f: (e, 0, f)),                    # b1[e][f]
                pl.BlockSpec((pl.Squeezed(), tf, H),
                             lambda i, e, f: (e, f, 0)),                    # W2[e][f, :]
                pl.BlockSpec((E, H), lambda i, e, f: (0, 0)),               # b2 (all experts)
            ],
            out_specs=pl.BlockSpec((tm, H), lambda i, e, f: (i, 0)),
            scratch_shapes=[pltpu.VMEM((tm, H), jnp.float32),               # acc
                            pltpu.VMEM((tm, E), jnp.float32),               # gates
                            pltpu.VMEM((tm, 1), jnp.float32)],              # gate col
        ),
        compiler_params=pltpu.CompilerParams(
            dimension_semantics=("parallel", "arbitrary", "arbitrary"),
            vmem_limit_bytes=vmem_limit),
    )(x_flat, wg, bg2, w1, b1_3, w2, b2)
    return out.reshape(B, S, H)


def init_params(key, hidden_size, num_experts, expert_hidden_dim):
    ks = jax.random.split(key, 6)
    s_h = 1.0 / jnp.sqrt(hidden_size)
    s_f = 1.0 / jnp.sqrt(expert_hidden_dim)
    return {
        "wg": jax.random.uniform(ks[0], (hidden_size, num_experts),
                                 jnp.float32, -s_h, s_h),
        "bg": jax.random.uniform(ks[1], (num_experts,), jnp.float32, -s_h, s_h),
        "w1": jax.random.uniform(ks[2], (num_experts, hidden_size, expert_hidden_dim),
                                 jnp.float32, -s_h, s_h),
        "b1": jax.random.uniform(ks[3], (num_experts, expert_hidden_dim),
                                 jnp.float32, -s_h, s_h),
        "w2": jax.random.uniform(ks[4], (num_experts, expert_hidden_dim, hidden_size),
                                 jnp.float32, -s_f, s_f),
        "b2": jax.random.uniform(ks[5], (num_experts, hidden_size),
                                 jnp.float32, -s_f, s_f),
    }


def moe_reference(x, params):
    """Pure-JAX reference of the (intended) MoE forward."""
    B, S, H = x.shape
    xf = x.reshape(-1, H)
    gate = jax.nn.softmax(xf @ params["wg"] + params["bg"], axis=-1)    # (N, E)
    outs = []
    for e in range(params["w1"].shape[0]):
        h = jnp.maximum(xf @ params["w1"][e] + params["b1"][e], 0.0)
        outs.append(h @ params["w2"][e] + params["b2"][e])
    expert_outputs = jnp.stack(outs, axis=1)                            # (N, E, H)
    out = jnp.einsum("be,bed->bd", gate, expert_outputs)
    return out.reshape(B, S, H)


if __name__ == "__main__":
    # Small shapes consistent with the module's [batch, seq, hidden] input.
    batch, seq, hidden = 2, 8, 32
    num_experts, expert_hidden = 3, 64

    key = jax.random.PRNGKey(0)
    k_x, k_p = jax.random.split(key)
    x = jax.random.normal(k_x, (batch, seq, hidden), jnp.float32)
    params = init_params(k_p, hidden, num_experts, expert_hidden)

    out = moe_forward(x, params)
    out = jax.block_until_ready(out)

    ref = moe_reference(x, params)
    assert out.shape == (batch, seq, hidden)
    assert jnp.allclose(out, ref, atol=2e-5, rtol=2e-5), "mismatch vs reference"

    print("KERNEL_OK")
</pallas_src>

<mosaic_0001>
module attributes {stable_mosaic.version = 11 : i64} {
  func.func @moe_kernel(%arg0: i32, %arg1: i32, %arg2: i32, %arg3: memref<8x32xf32, #tpu.memory_space<vmem>>, %arg4: memref<32x3xf32, #tpu.memory_space<vmem>>, %arg5: memref<1x3xf32, #tpu.memory_space<vmem>>, %arg6: memref<1x32x64xf32, #tpu.memory_space<vmem>>, %arg7: memref<1x1x64xf32, #tpu.memory_space<vmem>>, %arg8: memref<1x64x32xf32, #tpu.memory_space<vmem>>, %arg9: memref<3x32xf32, #tpu.memory_space<vmem>>, %arg10: memref<8x32xf32, #tpu.memory_space<vmem>>, %arg11: memref<8x32xf32, #tpu.memory_space<vmem>>, %arg12: memref<8x3xf32, #tpu.memory_space<vmem>>, %arg13: memref<8x1xf32, #tpu.memory_space<vmem>>) attributes {dimension_semantics = [#tpu.dimension_semantics<parallel>, #tpu.dimension_semantics<arbitrary>, #tpu.dimension_semantics<arbitrary>], iteration_bounds = array<i64: 2, 3, 1>, scalar_prefetch = 0 : i64, scratch_operands = 3 : i64, tpu.core_type = #tpu.core_type<tc>, window_params = [{transform_indices = @transform_0, window_bounds = array<i64: 8, 32>}, {pipeline_mode = #tpu.pipeline_mode<synchronous>, transform_indices = @transform_1, window_bounds = array<i64: 32, 3>}, {pipeline_mode = #tpu.pipeline_mode<synchronous>, transform_indices = @transform_2, window_bounds = array<i64: 1, 3>}, {transform_indices = @transform_3, window_bounds = array<i64: 1, 32, 64>}, {transform_indices = @transform_4, window_bounds = array<i64: 1, 1, 64>}, {transform_indices = @transform_5, window_bounds = array<i64: 1, 64, 32>}, {pipeline_mode = #tpu.pipeline_mode<synchronous>, transform_indices = @transform_6, window_bounds = array<i64: 3, 32>}, {transform_indices = @transform_7, window_bounds = array<i64: 8, 32>}]} {
    %c0_i32 = arith.constant 0 : i32
    %0 = arith.cmpi eq, %arg1, %c0_i32 : i32
    %c0_i32_0 = arith.constant 0 : i32
    %1 = arith.cmpi eq, %arg2, %c0_i32_0 : i32
    %2 = arith.andi %0, %1 : i1
    %3 = arith.extui %2 : i1 to i32
    %c0_i32_1 = arith.constant 0 : i32
    %4 = arith.cmpi ne, %3, %c0_i32_1 : i32
    scf.if %4 {
      %cst_24 = arith.constant 0.000000e+00 : f32
      %32 = vector.broadcast %cst_24 : f32 to vector<8x32xf32>
      %c0_25 = arith.constant 0 : index
      %c0_26 = arith.constant 0 : index
      %33 = vector.load %arg11[%c0_25, %c0_26] : memref<8x32xf32, #tpu.memory_space<vmem>>, vector<8x32xf32>
      tpu.vector_store %arg11[%c0_25, %c0_26], %32 {strides = array<i32>} : memref<8x32xf32, #tpu.memory_space<vmem>>, vector<8x32xf32>,
      %c0_27 = arith.constant 0 : index
      %c0_28 = arith.constant 0 : index
      %34 = vector.load %arg3[%c0_27, %c0_28] : memref<8x32xf32, #tpu.memory_space<vmem>>, vector<8x32xf32>
      %c0_29 = arith.constant 0 : index
      %c0_30 = arith.constant 0 : index
      %35 = vector.load %arg4[%c0_29, %c0_30] : memref<32x3xf32, #tpu.memory_space<vmem>>, vector<32x3xf32>
      %cst_31 = arith.constant dense<0.000000e+00> : vector<8x3xf32>
      %36 = tpu.matmul %34, %35, %cst_31 {dimension_numbers = #tpu.dot_dimension_numbers<[1], [0], [0], [1], [0, 0, 1, 1], [], []>} : vector<8x32xf32>, vector<32x3xf32>, vector<8x3xf32> -> vector<8x3xf32>
      %c0_32 = arith.constant 0 : index
      %c0_33 = arith.constant 0 : index
      %37 = vector.load %arg5[%c0_32, %c0_33] : memref<1x3xf32, #tpu.memory_space<vmem>>, vector<1x3xf32>
      %38 = vector.broadcast %37 : vector<1x3xf32> to vector<8x3xf32>
      %39 = arith.addf %36, %38 : vector<8x3xf32>
      %cst_34 = arith.constant dense<0xFF800000> : vector<8xf32>
      %40 = vector.multi_reduction <maximumf>, %39, %cst_34 [1] : vector<8x3xf32> to vector<8xf32>
      %41 = vector.shape_cast %40 : vector<8xf32> to vector<8x1xf32>
      %42 = vector.broadcast %41 : vector<8x1xf32> to vector<8x3xf32>
      %43 = arith.subf %39, %42 : vector<8x3xf32>
      %44 = math.exp %43 : vector<8x3xf32>
      %cst_35 = arith.constant dense<0.000000e+00> : vector<8xf32>
      %45 = vector.multi_reduction <add>, %44, %cst_35 [1] : vector<8x3xf32> to vector<8xf32>
      %46 = vector.shape_cast %45 : vector<8xf32> to vector<8x1xf32>
      %47 = vector.broadcast %46 : vector<8x1xf32> to vector<8x3xf32>
      %48 = arith.divf %44, %47 : vector<8x3xf32>
      %c0_36 = arith.constant 0 : index
      %c0_37 = arith.constant 0 : index
      %49 = vector.load %arg12[%c0_36, %c0_37] : memref<8x3xf32, #tpu.memory_space<vmem>>, vector<8x3xf32>
      tpu.vector_store %arg12[%c0_36, %c0_37], %48 {strides = array<i32>} : memref<8x3xf32, #tpu.memory_space<vmem>>, vector<8x3xf32>,
    } else {
    }
    %c0_i32_2 = arith.constant 0 : i32
    %5 = arith.cmpi eq, %arg2, %c0_i32_2 : i32
    %6 = arith.extui %5 : i1 to i32
    %c0_i32_3 = arith.constant 0 : i32
    %7 = arith.cmpi ne, %6, %c0_i32_3 : i32
    scf.if %7 {
      %32 = tpu.iota {dimensions = array<i32: 1>} : vector<8x3xi32>
      %33 = vector.broadcast %arg1 : i32 to vector<8x3xi32>
      %34 = arith.cmpi eq, %32, %33 : vector<8x3xi32>
      %c0_24 = arith.constant 0 : index
      %c0_25 = arith.constant 0 : index
      %35 = vector.load %arg12[%c0_24, %c0_25] : memref<8x3xf32, #tpu.memory_space<vmem>>, vector<8x3xf32>
      %cst_26 = arith.constant 0.000000e+00 : f32
      %36 = vector.broadcast %cst_26 : f32 to vector<8x3xf32>
      %37 = arith.select %34, %35, %36 : vector<8x3xi1>, vector<8x3xf32>
      %cst_27 = arith.constant dense<0.000000e+00> : vector<8xf32>
      %38 = vector.multi_reduction <add>, %37, %cst_27 [1] : vector<8x3xf32> to vector<8xf32>
      %39 = vector.shape_cast %38 : vector<8xf32> to vector<8x1xf32>
      %c0_28 = arith.constant 0 : index
      %c0_29 = arith.constant 0 : index
      %40 = vector.load %arg13[%c0_28, %c0_29] : memref<8x1xf32, #tpu.memory_space<vmem>>, vector<8x1xf32>
      tpu.vector_store %arg13[%c0_28, %c0_29], %39 {strides = array<i32>} : memref<8x1xf32, #tpu.memory_space<vmem>>, vector<8x1xf32>,
    } else {
    }
    %c0 = arith.constant 0 : index
    %c0_4 = arith.constant 0 : index
    %8 = vector.load %arg3[%c0, %c0_4] : memref<8x32xf32, #tpu.memory_space<vmem>>, vector<8x32xf32>
    %c0_5 = arith.constant 0 : index
    %c0_6 = arith.constant 0 : index
    %c0_7 = arith.constant 0 : index
    %9 = vector.load %arg6[%c0_5, %c0_6, %c0_7] : memref<1x32x64xf32, #tpu.memory_space<vmem>>, vector<1x32x64xf32>
    %10 = vector.shape_cast %9 : vector<1x32x64xf32> to vector<32x64xf32>
    %cst = arith.constant dense<0.000000e+00> : vector<8x64xf32>
    %11 = tpu.matmul %8, %10, %cst {dimension_numbers = #tpu.dot_dimension_numbers<[1], [0], [0], [1], [0, 0, 1, 1], [], []>} : vector<8x32xf32>, vector<32x64xf32>, vector<8x64xf32> -> vector<8x64xf32>
    %c0_8 = arith.constant 0 : index
    %c0_9 = arith.constant 0 : index
    %c0_10 = arith.constant 0 : index
    %12 = vector.load %arg7[%c0_8, %c0_9, %c0_10] : memref<1x1x64xf32, #tpu.memory_space<vmem>>, vector<1x1x64xf32>
    %13 = vector.shape_cast %12 : vector<1x1x64xf32> to vector<1x64xf32>
    %14 = vector.broadcast %13 : vector<1x64xf32> to vector<8x64xf32>
    %15 = arith.addf %11, %14 : vector<8x64xf32>
    %cst_11 = arith.constant 0.000000e+00 : f32
    %16 = vector.broadcast %cst_11 : f32 to vector<8x64xf32>
    %17 = arith.maximumf %15, %16 : vector<8x64xf32>
    %c0_12 = arith.constant 0 : index
    %c0_13 = arith.constant 0 : index
    %18 = vector.load %arg13[%c0_12, %c0_13] : memref<8x1xf32, #tpu.memory_space<vmem>>, vector<8x1xf32>
    %19 = vector.broadcast %18 : vector<8x1xf32> to vector<8x64xf32>
    %20 = arith.mulf %19, %17 : vector<8x64xf32>
    %c0_14 = arith.constant 0 : index
    %c0_15 = arith.constant 0 : index
    %21 = vector.load %arg11[%c0_14, %c0_15] : memref<8x32xf32, #tpu.memory_space<vmem>>, vector<8x32xf32>
    %c0_16 = arith.constant 0 : index
    %c0_17 = arith.constant 0 : index
    %c0_18 = arith.constant 0 : index
    %22 = vector.load %arg8[%c0_16, %c0_17, %c0_18] : memref<1x64x32xf32, #tpu.memory_space<vmem>>, vector<1x64x32xf32>
    %23 = vector.shape_cast %22 : vector<1x64x32xf32> to vector<64x32xf32>
    %cst_19 = arith.constant dense<0.000000e+00> : vector<8x32xf32>
    %24 = tpu.matmul %20, %23, %cst_19 {dimension_numbers = #tpu.dot_dimension_numbers<[1], [0], [0], [1], [0, 0, 1, 1], [], []>} : vector<8x64xf32>, vector<64x32xf32>, vector<8x32xf32> -> vector<8x32xf32>
    %25 = arith.addf %21, %24 : vector<8x32xf32>
    %c0_20 = arith.constant 0 : index
    %c0_21 = arith.constant 0 : index
    %26 = vector.load %arg11[%c0_20, %c0_21] : memref<8x32xf32, #tpu.memory_space<vmem>>, vector<8x32xf32>
    tpu.vector_store %arg11[%c0_20, %c0_21], %25 {strides = array<i32>} : memref<8x32xf32, #tpu.memory_space<vmem>>, vector<8x32xf32>,
    %c2_i32 = arith.constant 2 : i32
    %27 = arith.cmpi eq, %arg1, %c2_i32 : i32
    %c0_i32_22 = arith.constant 0 : i32
    %28 = arith.cmpi eq, %arg2, %c0_i32_22 : i32
    %29 = arith.andi %27, %28 : i1
    %30 = arith.extui %29 : i1 to i32
    %c0_i32_23 = arith.constant 0 : i32
    %31 = arith.cmpi ne, %30, %c0_i32_23 : i32
    scf.if %31 {
      %c0_24 = arith.constant 0 : index
      %c0_25 = arith.constant 0 : index
      %32 = vector.load %arg11[%c0_24, %c0_25] : memref<8x32xf32, #tpu.memory_space<vmem>>, vector<8x32xf32>
      %c0_26 = arith.constant 0 : index
      %c0_27 = arith.constant 0 : index
      %33 = vector.load %arg12[%c0_26, %c0_27] : memref<8x3xf32, #tpu.memory_space<vmem>>, vector<8x3xf32>
      %c0_28 = arith.constant 0 : index
      %c0_29 = arith.constant 0 : index
      %34 = vector.load %arg9[%c0_28, %c0_29] : memref<3x32xf32, #tpu.memory_space<vmem>>, vector<3x32xf32>
      %cst_30 = arith.constant dense<0.000000e+00> : vector<8x32xf32>
      %35 = tpu.matmul %33, %34, %cst_30 {dimension_numbers = #tpu.dot_dimension_numbers<[1], [0], [0], [1], [0, 0, 1, 1], [], []>} : vector<8x3xf32>, vector<3x32xf32>, vector<8x32xf32> -> vector<8x32xf32>
      %36 = arith.addf %32, %35 : vector<8x32xf32>
      %c0_31 = arith.constant 0 : index
      %c0_32 = arith.constant 0 : index
      %37 = vector.load %arg11[%c0_31, %c0_32] : memref<8x32xf32, #tpu.memory_space<vmem>>, vector<8x32xf32>
      tpu.vector_store %arg11[%c0_31, %c0_32], %36 {strides = array<i32>} : memref<8x32xf32, #tpu.memory_space<vmem>>, vector<8x32xf32>,
      %c0_33 = arith.constant 0 : index
      %c0_34 = arith.constant 0 : index
      %38 = vector.load %arg11[%c0_33, %c0_34] : memref<8x32xf32, #tpu.memory_space<vmem>>, vector<8x32xf32>
      %c0_35 = arith.constant 0 : index
      %c0_36 = arith.constant 0 : index
      %39 = vector.load %arg10[%c0_35, %c0_36] : memref<8x32xf32, #tpu.memory_space<vmem>>, vector<8x32xf32>
      tpu.vector_store %arg10[%c0_35, %c0_36], %38 {strides = array<i32>} : memref<8x32xf32, #tpu.memory_space<vmem>>, vector<8x32xf32>,
    } else {
    }
    return
  }
  func.func @transform_0(%arg0: i32, %arg1: i32, %arg2: i32) -> (i32, i32) {
    %c0_i32 = arith.constant 0 : i32
    %c0_i32_0 = arith.constant 0 : i32
    return %arg0, %c0_i32 : i32, i32
  }
  func.func @transform_1(%arg0: i32, %arg1: i32, %arg2: i32) -> (i32, i32) {
    %c0_i32 = arith.constant 0 : i32
    %c0_i32_0 = arith.constant 0 : i32
    %c0_i32_1 = arith.constant 0 : i32
    return %c0_i32, %c0_i32_0 : i32, i32
  }
  func.func @transform_2(%arg0: i32, %arg1: i32, %arg2: i32) -> (i32, i32) {
    %c0_i32 = arith.constant 0 : i32
    %c0_i32_0 = arith.constant 0 : i32
    %c0_i32_1 = arith.constant 0 : i32
    return %c0_i32, %c0_i32_0 : i32, i32
  }
  func.func @transform_3(%arg0: i32, %arg1: i32, %arg2: i32) -> (i32, i32, i32) {
    %c0_i32 = arith.constant 0 : i32
    %c0_i32_0 = arith.constant 0 : i32
    return %arg1, %c0_i32, %arg2 : i32, i32, i32
  }
  func.func @transform_4(%arg0: i32, %arg1: i32, %arg2: i32) -> (i32, i32, i32) {
    %c0_i32 = arith.constant 0 : i32
    %c0_i32_0 = arith.constant 0 : i32
    return %arg1, %c0_i32, %arg2 : i32, i32, i32
  }
  func.func @transform_5(%arg0: i32, %arg1: i32, %arg2: i32) -> (i32, i32, i32) {
    %c0_i32 = arith.constant 0 : i32
    %c0_i32_0 = arith.constant 0 : i32
    return %arg1, %arg2, %c0_i32 : i32, i32, i32
  }
  func.func @transform_6(%arg0: i32, %arg1: i32, %arg2: i32) -> (i32, i32) {
    %c0_i32 = arith.constant 0 : i32
    %c0_i32_0 = arith.constant 0 : i32
    %c0_i32_1 = arith.constant 0 : i32
    return %c0_i32, %c0_i32_0 : i32, i32
  }
  func.func @transform_7(%arg0: i32, %arg1: i32, %arg2: i32) -> (i32, i32) {
    %c0_i32 = arith.constant 0 : i32
    %c0_i32_0 = arith.constant 0 : i32
    return %arg0, %c0_i32 : i32, i32
  }
}

</mosaic_0001>

<llo_original>
// kernel: tpu_custom_call.1
$region0: #{tpu_custom_call.1}
  #allocation0 [shape = 'u32[]', space=smem, size = 0x4, offset = 0x4, fixed_abs, tag = 'smem constant byte address 0x4 - core index']
  #allocation1 [shape = 'u32[144,128]{1,0:T(1,128)}', space=vmem, size = 0x12000, scoped, tag = 'internal scratch']
  #allocation2 [shape = 'f32[8,32]{1,0:T(8,128)}', space=vmem, size = 0x1000, scoped, tag = 'scratch operand']
  #allocation3 [shape = 'f32[8,3]{1,0:T(8,128)}', space=vmem, size = 0x1000, scoped, tag = 'scratch operand']
  #allocation4 [shape = 'f32[8,1]{1,0:T(8,128)}', space=vmem, size = 0x1000, scoped, tag = 'scratch operand']
  %s0 = inlined_call_operand.vmem [shape: f32[16,32], index: 0, kind: input, shape index: {}]
  %s1 = inlined_call_operand.vmem [shape: f32[32,3], index: 1, kind: input, shape index: {}]
  %s2 = inlined_call_operand.vmem [shape: f32[1,3], index: 2, kind: input, shape index: {}]
  %s3 = inlined_call_operand.vmem [shape: f32[3,32,64], index: 3, kind: input, shape index: {}]
  %s4 = inlined_call_operand.vmem [shape: f32[3,1,64], index: 4, kind: input, shape index: {}]
  %s5 = inlined_call_operand.vmem [shape: f32[3,64,32], index: 5, kind: input, shape index: {}]
  %s6 = inlined_call_operand.vmem [shape: f32[3,32], index: 6, kind: input, shape index: {}]
  %s7 = inlined_call_operand.hbm [shape: f32[16,32], index: 7, kind: output, shape index: {}]
  %s8 = sld [smem:[#allocation0]]
  $region73: #{tpu_custom_call.1} parent=0
    _
  %s10 = ssub.s32 1, %s8
  %s11 = scalar_select 0, %s10, %s8
  $region1: #{tpu_custom_call.1} parent=0
    #allocation5 [shape = 'u8[8192]{0}', space=vmem, size = 0x2000, scoped, tag = 'output window, operand 0']
    #allocation6 [shape = 's32[2]{0}', space=sflag, size = 0x8, scoped, tag = 'scoped memory for tpu_custom_call.1']
    %12 = vsyncpa [#allocation6], 0
    %s13 = scalar_lea.sflag [#allocation6], 1
    %14 = vsyncpa %s13, 0
    loop: start=0, step=1, limit=8
    $region2: #{tpu_custom_call.1} parent=1 // loop_pre_header
      _
    $region3: #{tpu_custom_call.1} parent=1 // loop_header
      %s16 = sphi 0, %s20
      %p17 = scmp.ge.s32.totalorder %s16, 8
      %s23 = sphi 0, %s42
      %s24 = sphi 0, %s38
      %s25 = sphi 0, %s34
      %s26 = sphi 0, %s23
      %s27 = sphi 0, %s24
      %s28 = sphi 0, %s25
      %s29 = sphi 0, %s26
      %s30 = sphi 0, %s27
      %s31 = sphi 0, %s28
      %s45 = sphi 0, %s47
      %s48 = sphi 0, %s45
      %s49 = sphi 0, %s48
      %s65 = sphi 0, %s49
      %s69 = sphi 0, %s69
      %s71 = sphi 0, %s69
      %s72 = sphi 0, %s71
      %s86 = sphi 0, %s72
      %s90 = sphi 0, %s90
      %s92 = sphi 0, %s90
      %s93 = sphi 0, %s92
      %s107 = sphi 0, %s93
      %s115 = sphi 0, %s117
      %s118 = sphi 0, %s115
      %s119 = sphi 0, %s118
      %s135 = sphi 0, %s119
      %s143 = sphi 0, %s145
      %s146 = sphi 0, %s143
      %s147 = sphi 0, %s146
      %s163 = sphi 0, %s147
      %s171 = sphi 0, %s173
      %s174 = sphi 0, %s171
      %s175 = sphi 0, %s174
      %s191 = sphi 0, %s175
      %s195 = sphi 0, %s195
      %s197 = sphi 0, %s195
      %s198 = sphi 0, %s197
      %s212 = sphi 0, %s198
      %s218 = sphi 0, %s220
      %s221 = sphi 0, %s218
      %s222 = sphi 0, %s221
      %s238 = sphi 0, %s222
    $region4: #{tpu_custom_call.1} parent=1 // loop_header_branch
      %19 = sbr.rel (%p17) target = $region8
    $region5: #{tpu_custom_call.1} parent=1 // loop_body
      %s21 = ssub.s32 %s16, 1
      %s22 = ssub.s32 %s16, 2
      %s32 = sadd.s32 1, %s25
      %p33 = scmp.ge.s32.totalorder %s32, 1
      %s34 = scalar_select %p33, 0, %s32
      %s35 = sadd.s32 1, %s24
      %s36 = scalar_select %p33, %s35, %s24
      %p37 = scmp.ge.s32.totalorder %s36, 3
      %s38 = scalar_select %p37, 0, %s36
      %s39 = sadd.s32 1, %s23
      %s40 = scalar_select %p37, %s39, %s23
      %p41 = scmp.ge.s32.totalorder %s40, 2
      %s42 = scalar_select %p41, 0, %s40
      %s43 = ssub.s32 %s23, %s42
      %p44 = scmp.eq.s32.totalorder %s43, 0
      %s46 = sadd.s32 %s45, 1
      %s47 = scalar_select %p44, %s45, %s46
      %p50 = pneg %p44
      %p51 = scmp.eq.s32.totalorder %s16, 5
      %p52 = por %p50, %p51
      %p53 = scmp.ne.s32.totalorder %s45, %s48
      %p54 = scmp.eq.s32.totalorder %s16, 0
      %p55 = por %p53, %p54
      %p56 = scmp.ne.s32.totalorder %s45, %s48
      %p57 = scmp.eq.s32.totalorder %s21, 5
      %p58 = por %p56, %p57
      %p59 = scmp.ne.s32.totalorder %s48, %s49
      %p60 = scmp.eq.s32.totalorder %s21, 0
      %p61 = por %p59, %p60
      %p62 = scmp.ne.s32.totalorder %s48, %s49
      %p63 = scmp.eq.s32.totalorder %s22, 5
      %p64 = por %p62, %p63
      %p66 = scmp.ne.s32.totalorder %s49, %s65
      %p67 = scmp.eq.s32.totalorder %s22, 0
      %p68 = por %p66, %p67
      %s70 = sadd.s32 %s69, 1
      %p73 = scmp.eq.s32.totalorder %s16, 5
      %p74 = scmp.ne.s32.totalorder %s69, %s71
      %p75 = scmp.eq.s32.totalorder %s16, 0
      %p76 = por %p74, %p75
      %p77 = scmp.ne.s32.totalorder %s69, %s71
      %p78 = scmp.eq.s32.totalorder %s21, 5
      %p79 = por %p77, %p78
      %p80 = scmp.ne.s32.totalorder %s71, %s72
      %p81 = scmp.eq.s32.totalorder %s21, 0
      %p82 = por %p80, %p81
      %p83 = scmp.ne.s32.totalorder %s71, %s72
      %p84 = scmp.eq.s32.totalorder %s22, 5
      %p85 = por %p83, %p84
      %p87 = scmp.ne.s32.totalorder %s72, %s86
      %p88 = scmp.eq.s32.totalorder %s22, 0
      %p89 = por %p87, %p88
      %s91 = sadd.s32 %s90, 1
      %p94 = scmp.eq.s32.totalorder %s16, 5
      %p95 = scmp.ne.s32.totalorder %s90, %s92
      %p96 = scmp.eq.s32.totalorder %s16, 0
      %p97 = por %p95, %p96
      %p98 = scmp.ne.s32.totalorder %s90, %s92
      %p99 = scmp.eq.s32.totalorder %s21, 5
      %p100 = por %p98, %p99
      %p101 = scmp.ne.s32.totalorder %s92, %s93
      %p102 = scmp.eq.s32.totalorder %s21, 0
      %p103 = por %p101, %p102
      %p104 = scmp.ne.s32.totalorder %s92, %s93
      %p105 = scmp.eq.s32.totalorder %s22, 5
      %p106 = por %p104, %p105
      %p108 = scmp.ne.s32.totalorder %s93, %s107
      %p109 = scmp.eq.s32.totalorder %s22, 0
      %p110 = por %p108, %p109
      %s111 = ssub.s32 %s24, %s38
      %s112 = ssub.s32 %s25, %s34
      %s113 = sor.u32 %s111, %s112
      %p114 = scmp.eq.s32.totalorder %s113, 0
      %s116 = sadd.s32 %s115, 1
      %s117 = scalar_select %p114, %s115, %s116
      %p120 = pneg %p114
      %p121 = scmp.eq.s32.totalorder %s16, 5
      %p122 = por %p120, %p121
      %p123 = scmp.ne.s32.totalorder %s115, %s118
      %p124 = scmp.eq.s32.totalorder %s16, 0
      %p125 = por %p123, %p124
      %p126 = scmp.ne.s32.totalorder %s115, %s118
      %p127 = scmp.eq.s32.totalorder %s21, 5
      %p128 = por %p126, %p127
      %p129 = scmp.ne.s32.totalorder %s118, %s119
      %p130 = scmp.eq.s32.totalorder %s21, 0
      %p131 = por %p129, %p130
      %p132 = scmp.ne.s32.totalorder %s118, %s119
      %p133 = scmp.eq.s32.totalorder %s22, 5
      %p134 = por %p132, %p133
      %p136 = scmp.ne.s32.totalorder %s119, %s135
      %p137 = scmp.eq.s32.totalorder %s22, 0
      %p138 = por %p136, %p137
      %s139 = ssub.s32 %s24, %s38
      %s140 = ssub.s32 %s25, %s34
      %s141 = sor.u32 %s139, %s140
      %p142 = scmp.eq.s32.totalorder %s141, 0
      %s144 = sadd.s32 %s143, 1
      %s145 = scalar_select %p142, %s143, %s144
      %p148 = pneg %p142
      %p149 = scmp.eq.s32.totalorder %s16, 5
      %p150 = por %p148, %p149
      %p151 = scmp.ne.s32.totalorder %s143, %s146
      %p152 = scmp.eq.s32.totalorder %s16, 0
      %p153 = por %p151, %p152
      %p154 = scmp.ne.s32.totalorder %s143, %s146
      %p155 = scmp.eq.s32.totalorder %s21, 5
      %p156 = por %p154, %p155
      %p157 = scmp.ne.s32.totalorder %s146, %s147
      %p158 = scmp.eq.s32.totalorder %s21, 0
      %p159 = por %p157, %p158
      %p160 = scmp.ne.s32.totalorder %s146, %s147
      %p161 = scmp.eq.s32.totalorder %s22, 5
      %p162 = por %p160, %p161
      %p164 = scmp.ne.s32.totalorder %s147, %s163
      %p165 = scmp.eq.s32.totalorder %s22, 0
      %p166 = por %p164, %p165
      %s167 = ssub.s32 %s24, %s38
      %s168 = ssub.s32 %s25, %s34
      %s169 = sor.u32 %s167, %s168
      %p170 = scmp.eq.s32.totalorder %s169, 0
      %s172 = sadd.s32 %s171, 1
      %s173 = scalar_select %p170, %s171, %s172
      %p176 = pneg %p170
      %p177 = scmp.eq.s32.totalorder %s16, 5
      %p178 = por %p176, %p177
      %p179 = scmp.ne.s32.totalorder %s171, %s174
      %p180 = scmp.eq.s32.totalorder %s16, 0
      %p181 = por %p179, %p180
      %p182 = scmp.ne.s32.totalorder %s171, %s174
      %p183 = scmp.eq.s32.totalorder %s21, 5
      %p184 = por %p182, %p183
      %p185 = scmp.ne.s32.totalorder %s174, %s175
      %p186 = scmp.eq.s32.totalorder %s21, 0
      %p187 = por %p185, %p186
      %p188 = scmp.ne.s32.totalorder %s174, %s175
      %p189 = scmp.eq.s32.totalorder %s22, 5
      %p190 = por %p188, %p189
      %p192 = scmp.ne.s32.totalorder %s175, %s191
      %p193 = scmp.eq.s32.totalorder %s22, 0
      %p194 = por %p192, %p193
      %s196 = sadd.s32 %s195, 1
      %p199 = scmp.eq.s32.totalorder %s16, 5
      %p200 = scmp.ne.s32.totalorder %s195, %s197
      %p201 = scmp.eq.s32.totalorder %s16, 0
      %p202 = por %p200, %p201
      %p203 = scmp.ne.s32.totalorder %s195, %s197
      %p204 = scmp.eq.s32.totalorder %s21, 5
      %p205 = por %p203, %p204
      %p206 = scmp.ne.s32.totalorder %s197, %s198
      %p207 = scmp.eq.s32.totalorder %s21, 0
      %p208 = por %p206, %p207
      %p209 = scmp.ne.s32.totalorder %s197, %s198
      %p210 = scmp.eq.s32.totalorder %s22, 5
      %p211 = por %p209, %p210
      %p213 = scmp.ne.s32.totalorder %s198, %s212
      %p214 = scmp.eq.s32.totalorder %s22, 0
      %p215 = por %p213, %p214
      %s216 = ssub.s32 %s23, %s42
      %p217 = scmp.eq.s32.totalorder %s216, 0
      %s219 = sadd.s32 %s218, 1
      %s220 = scalar_select %p217, %s218, %s219
      %p223 = pneg %p217
      %p224 = scmp.eq.s32.totalorder %s16, 5
      %p225 = por %p223, %p224
      %p226 = scmp.ne.s32.totalorder %s218, %s221
      %p227 = scmp.eq.s32.totalorder %s16, 0
      %p228 = por %p226, %p227
      %p229 = scmp.ne.s32.totalorder %s218, %s221
      %p230 = scmp.eq.s32.totalorder %s21, 5
      %p231 = por %p229, %p230
      %p232 = scmp.ne.s32.totalorder %s221, %s222
      %p233 = scmp.eq.s32.totalorder %s21, 0
      %p234 = por %p232, %p233
      %p235 = scmp.ne.s32.totalorder %s221, %s222
      %p236 = scmp.eq.s32.totalorder %s22, 5
      %p237 = por %p235, %p236
      %p239 = scmp.ne.s32.totalorder %s222, %s238
      %p240 = scmp.eq.s32.totalorder %s22, 0
      %p241 = por %p239, %p240
      %p242 = scmp.le.s32.totalorder 1, %s16
      %p243 = scmp.lt.s32.totalorder %s16, 7
      %p244 = pnand %p242, %p243
      %p245 = pneg %p244
      // Predicated region
      $region9: #{tpu_custom_call.1} parent=5 // pred_check
        _
      $region10: #{tpu_custom_call.1} parent=5 // pred_check_branch
        %247 = sbr.rel (%p244) target = $region12
      $region11: #{tpu_custom_call.1} parent=5 // pred_region
        %s248 = ssub.s32 %s16, 1
        // Predicated region
        $region13: #{tpu_custom_call.1} parent=11 // pred_check
          %p249 = pneg %p82
        $region14: #{tpu_custom_call.1} parent=11 // pred_check_branch
          %251 = sbr.rel (%p249) target = $region16
        $region15: #{tpu_custom_call.1} parent=11 // pred_region
          _
        $region16: #{tpu_custom_call.1} parent=11 // pred_fallthru
          _
        // Predicated region
        $region17: #{tpu_custom_call.1} parent=11 // pred_check
          %p252 = pneg %p103
        $region18: #{tpu_custom_call.1} parent=11 // pred_check_branch
          %254 = sbr.rel (%p252) target = $region20
        $region19: #{tpu_custom_call.1} parent=11 // pred_region
          _
        $region20: #{tpu_custom_call.1} parent=11 // pred_fallthru
          _
        // Predicated region
        $region21: #{tpu_custom_call.1} parent=11 // pred_check
          %p255 = pneg %p208
        $region22: #{tpu_custom_call.1} parent=11 // pred_check_branch
          %257 = sbr.rel (%p255) target = $region24
        $region23: #{tpu_custom_call.1} parent=11 // pred_region
          _
        $region24: #{tpu_custom_call.1} parent=11 // pred_fallthru
          _
      $region12: #{tpu_custom_call.1} parent=5 // pred_fallthru
        _
      %p258 = scmp.lt.s32.totalorder %s16, 6
      // Predicated region
      $region25: #{tpu_custom_call.1} parent=5 // pred_check
        %p259 = pneg %p258
      $region26: #{tpu_custom_call.1} parent=5 // pred_check_branch
        %261 = sbr.rel (%p259) target = $region28
      $region27: #{tpu_custom_call.1} parent=5 // pred_region
        // Predicated region
        $region29: #{tpu_custom_call.1} parent=27 // pred_check
          %p262 = pneg %p55
        $region30: #{tpu_custom_call.1} parent=27 // pred_check_branch
          %264 = sbr.rel (%p262) target = $region32
        $region31: #{tpu_custom_call.1} parent=27 // pred_region
          %p265 = scmp.lt.s32.totalorder %s23, 1
          %s266 = scalar_select %p265, %s23, 1
          %s267 = smul.addr %s266, 8
          %s268 = scalar_lea.vmem %s0, %s267
        $region32: #{tpu_custom_call.1} parent=27 // pred_fallthru
          _
        // Predicated region
        $region33: #{tpu_custom_call.1} parent=27 // pred_check
          %p269 = pneg %p125
        $region34: #{tpu_custom_call.1} parent=27 // pred_check_branch
          %271 = sbr.rel (%p269) target = $region36
        $region35: #{tpu_custom_call.1} parent=27 // pred_region
          %p272 = scmp.lt.s32.totalorder %s24, 2
          %s273 = scalar_select %p272, %s24, 2
          %p274 = scmp.lt.s32.totalorder %s25, 0
          %s275 = scalar_select %p274, %s25, 0
          %s276 = smul.addr %s273, 4
          %s277 = sadd.s32 %s275, %s276
          %s278 = smul.addr %s277, 8
          %s279 = scalar_lea.vmem %s3, %s278
        $region36: #{tpu_custom_call.1} parent=27 // pred_fallthru
          _
        // Predicated region
        $region37: #{tpu_custom_call.1} parent=27 // pred_check
          %p280 = pneg %p153
        $region38: #{tpu_custom_call.1} parent=27 // pred_check_branch
          %282 = sbr.rel (%p280) target = $region40
        $region39: #{tpu_custom_call.1} parent=27 // pred_region
          %p283 = scmp.lt.s32.totalorder %s24, 2
          %s284 = scalar_select %p283, %s24, 2
          %p285 = scmp.lt.s32.totalorder %s25, 0
          %s286 = scalar_select %p285, %s25, 0
          %s287 = sadd.s32 %s286, %s284
          %s288 = scalar_lea.vmem %s4, %s287
        $region40: #{tpu_custom_call.1} parent=27 // pred_fallthru
          _
        // Predicated region
        $region41: #{tpu_custom_call.1} parent=27 // pred_check
          %p289 = pneg %p181
        $region42: #{tpu_custom_call.1} parent=27 // pred_check_branch
          %291 = sbr.rel (%p289) target = $region44
        $region43: #{tpu_custom_call.1} parent=27 // pred_region
          %s292 = smul.u32 8, %s25
          %p293 = scmp.lt.s32.totalorder %s24, 2
          %s294 = scalar_select %p293, %s24, 2
          %p295 = scmp.lt.s32.totalorder %s292, 7
          %s296 = scalar_select %p295, %s292, 7
          %s297 = smul.addr %s294, 8
          %s298 = sadd.s32 %s296, %s297
          %s299 = smul.addr %s298, 8
          %s300 = scalar_lea.vmem %s5, %s299
          %s301 = smul.u32 8, %s25
        $region44: #{tpu_custom_call.1} parent=27 // pred_fallthru
          _
      $region28: #{tpu_custom_call.1} parent=5 // pred_fallthru
        _
      %p302 = scmp.le.s32.totalorder 1, %s16
      %p303 = scmp.lt.s32.totalorder %s16, 7
      %p304 = pnand %p302, %p303
      %p305 = pneg %p304
      // Predicated region
      $region45: #{tpu_custom_call.1} parent=5 // pred_check
        _
      $region46: #{tpu_custom_call.1} parent=5 // pred_check_branch
        %307 = sbr.rel (%p304) target = $region48
      $region47: #{tpu_custom_call.1} parent=5 // pred_region
        %s308 = ssub.s32 %s16, 1
        %p309 = scmp.lt.s32.totalorder %s26, 1
        %s310 = scalar_select %p309, %s26, 1
        %s311 = smul.addr %s310, 8
        %s312 = scalar_lea.vmem %s0, %s311
        %p313 = pneg %p61
        %p314 = pneg %p58
        %p315 = pneg %p82
        %p316 = pneg %p79
        %p317 = pneg %p103
        %p318 = pneg %p100
        %p319 = scmp.lt.s32.totalorder %s27, 2
        %s320 = scalar_select %p319, %s27, 2
        %p321 = scmp.lt.s32.totalorder %s28, 0
        %s322 = scalar_select %p321, %s28, 0
        %s323 = smul.addr %s320, 4
        %s324 = sadd.s32 %s322, %s323
        %s325 = smul.addr %s324, 8
        %s326 = scalar_lea.vmem %s3, %s325
        %p327 = pneg %p131
        %p328 = pneg %p128
        %p329 = scmp.lt.s32.totalorder %s27, 2
        %s330 = scalar_select %p329, %s27, 2
        %p331 = scmp.lt.s32.totalorder %s28, 0
        %s332 = scalar_select %p331, %s28, 0
        %s333 = sadd.s32 %s332, %s330
        %s334 = scalar_lea.vmem %s4, %s333
        %p335 = pneg %p159
        %p336 = pneg %p156
        %s337 = smul.u32 8, %s28
        %p338 = scmp.lt.s32.totalorder %s27, 2
        %s339 = scalar_select %p338, %s27, 2
        %p340 = scmp.lt.s32.totalorder %s337, 7
        %s341 = scalar_select %p340, %s337, 7
        %s342 = smul.addr %s339, 8
        %s343 = sadd.s32 %s341, %s342
        %s344 = smul.addr %s343, 8
        %s345 = scalar_lea.vmem %s5, %s344
        %p346 = pneg %p187
        %p347 = pneg %p184
        %p348 = pneg %p208
        %p349 = pneg %p205
        %p350 = pneg %p234
        %p351 = pneg %p231
        %s352 = sand.u32 %s221, 1
        %s353 = scalar_lea.sflag [#allocation6], %s352
        %s354 = sand.u32 %s221, 1
        %s355 = smul.addr %s354, 8
        %s356 = scalar_lea.vmem [#allocation5], %s355
        %p357 = scmp.lt.s32.totalorder %s26, 1
        %s358 = scalar_select %p357, %s26, 1
        %s359 = smul.addr %s358, 8
        %s360 = scalar_lea.vmem %s0, %s359
        %p361 = scmp.lt.s32.totalorder %s27, 2
        %s362 = scalar_select %p361, %s27, 2
        %p363 = scmp.lt.s32.totalorder %s28, 0
        %s364 = scalar_select %p363, %s28, 0
        %s365 = smul.addr %s362, 4
        %s366 = sadd.s32 %s364, %s365
        %s367 = smul.addr %s366, 8
        %s368 = scalar_lea.vmem %s3, %s367
        %p369 = scmp.lt.s32.totalorder %s27, 2
        %s370 = scalar_select %p369, %s27, 2
        %p371 = scmp.lt.s32.totalorder %s28, 0
        %s372 = scalar_select %p371, %s28, 0
        %s373 = sadd.s32 %s372, %s370
        %s374 = scalar_lea.vmem %s4, %s373
        %s375 = smul.u32 8, %s28
        %p376 = scmp.lt.s32.totalorder %s27, 2
        %s377 = scalar_select %p376, %s27, 2
        %p378 = scmp.lt.s32.totalorder %s375, 7
        %s379 = scalar_select %p378, %s375, 7
        %s380 = smul.addr %s377, 8
        %s381 = sadd.s32 %s379, %s380
        %s382 = smul.addr %s381, 8
        %s383 = scalar_lea.vmem %s5, %s382
        %s384 = smul.u32 8, %s28
        %p385 = scmp.eq.s32.totalorder %s27, 0
        %p386 = scmp.eq.s32.totalorder %s28, 0
        %p387 = pnand %p385, %p386
        %p388 = pneg %p387
        // Predicated region
        $region49: #{tpu_custom_call.1} parent=47 // pred_check
          _
        $region50: #{tpu_custom_call.1} parent=47 // pred_check_branch
          %390 = sbr.rel (%p387) target = $region52
        $region51: #{tpu_custom_call.1} parent=47 // pred_region
          %vm391 = vcmask 261120
          %392 = vst.msk [vmem:[#allocation2] sm:$0xff] %vm391, 0.0
          %v393 = vld [vmem:[%s360] sm:$0xff]
          %v394 = vld [vmem:[%s1] sm:$0xff]
          %v395 = vld [vmem:[%s1 + $0x8] sm:$0xff]
          %v396 = vld [vmem:[%s1 + $0x10] sm:$0xff]
          %v397 = vld [vmem:[%s1 + $0x18] sm:$0xff]
          %v398 = vld [vmem:[%s2] sm:$0x1]
          %v400 = vlaneseq
          %v401 = vshrl.u32 %v400, 7
          %v402 = vsub.s32 0, %v401
          %v403 = vrot.slane %v398, %v402
          %v406 = vsel %vm391, %v393, 0
          %408 = vmatprep.subr.mxu0 0.0
          %409 = vmatpush1.msra.mxu0 %v394
          %410 = vmatprep.subr.mxu0 0.0
          %411 = vmatpush1.msra.mxu0 %v395
          %412 = vmatprep.subr.mxu0 0.0
          %413 = vmatpush1.msra.mxu0 %v396
          %414 = vmatprep.subr.mxu0 0.0
          %415 = vmatpush1.msra.mxu0 %v397
          %416 = vmatprep.subr.mxu0 0.0
          %417 = vmatpush1.msra.mxu0 0.0
          %418 = vmatprep.subr.mxu0 0.0
          %419 = vmatpush1.msra.mxu0 0.0
          %420 = vmatprep.subr.mxu0 0.0
          %421 = vmatpush1.msra.mxu0 0.0
          %422 = vmatprep.subr.mxu0 0.0
          %423 = vmatpush1.msra.mxu0 0.0
          %424 = vmatprep.subr.mxu0 0.0
          %425 = vmatpush1.msra.mxu0 0.0
          %426 = vmatprep.subr.mxu0 0.0
          %427 = vmatpush1.msra.mxu0 0.0
          %428 = vmatprep.subr.mxu0 0.0
          %429 = vmatpush1.msra.mxu0 0.0
          %430 = vmatprep.subr.mxu0 0.0
          %431 = vmatpush1.msra.mxu0 0.0
          %432 = vmatprep.subr.mxu0 0.0
          %433 = vmatpush1.msra.mxu0 0.0
          %434 = vmatprep.subr.mxu0 0.0
          %435 = vmatpush1.msra.mxu0 0.0
          %436 = vmatprep.subr.mxu0 0.0
          %437 = vmatpush1.msra.mxu0 0.0
          %438 = vmatprep.subr.mxu0 0.0
          %439 = vmatpush1.msra.mxu0 0.0
          %440 = vmatprep.subr.mxu0 0.0
          %441 = vmatpush1.msra.mxu0 0.0
          %442 = vmatprep.subr.mxu0 0.0
          %443 = vmatpush1.msra.mxu0 0.0
          %444 = vmatprep.subr.mxu0 0.0
          %445 = vmatpush1.msra.mxu0 0.0
          %446 = vmatprep.subr.mxu0 0.0
          %447 = vmatpush1.msra.mxu0 0.0
          %448 = vmatprep.subr.mxu0 0.0
          %449 = vmatpush1.msra.mxu0 0.0
          %450 = vmatprep.subr.mxu0 0.0
          %451 = vmatpush1.msra.mxu0 0.0
          %452 = vmatprep.subr.mxu0 0.0
          %453 = vmatpush1.msra.mxu0 0.0
          %454 = vmatprep.subr.mxu0 0.0
          %455 = vmatpush1.msra.mxu0 0.0
          %456 = vmatprep.subr.mxu0 0.0
          %457 = vmatpush1.msra.mxu0 0.0
          %458 = vmatprep.subr.mxu0 0.0
          %459 = vmatpush1.msra.mxu0 0.0
          %460 = vmatprep.subr.mxu0 0.0
          %461 = vmatpush1.msra.mxu0 0.0
          %462 = vmatprep.subr.mxu0 0.0
          %463 = vmatpush1.msra.mxu0 0.0
          %464 = vmatprep.subr.mxu0 0.0
          %465 = vmatpush1.msra.mxu0 0.0
          %466 = vmatprep.subr.mxu0 0.0
          %467 = vmatpush1.msra.mxu0 0.0
          %468 = vmatprep.subr.mxu0 0.0
          %469 = vmatpush1.msra.mxu0 0.0
          %470 = vmatprep.subr.mxu0 0.0
          %471 = vmatpush1.msra.mxu0 0.0
          %472 = vmatprep.mubr.f32.mxu0 0.0
          %473 = vmatmul.mubr.f32.gmra.mrb[0].mxu0 %v406
          %v474 = vpop.f32.mrb[0].mxu0
          %v475 = vadd.f32 %v403, %v474
          %v476 = vpop.f32.mrb[0].mxu0
          %477 = vdwg.mxu0
          %vm478 = vcmask 23552
          %v479 = vsel %vm478, %v475, -inf
          %480 = vmax.xlane.f32.xlu0 %v479
          %v481 = vpop.xlane.xlu0 %480
          %v482 = vsub.f32 %v475, %v481
          %v483 = vmul.f32 %v482, 1.442695
          %v484 = vpow.pop %v483
          %v485 = vsel %vm478, %v484, 0.0
          %486 = vadd.xlane.f32.xlu0 %v485
          %v487 = vpop.xlane.xlu0 %486
          %v488 = vrcp.pop %v487
          %v489 = vmul.f32 %v484, %v488
          %490 = vst.msk [vmem:[#allocation3] sm:$0xff] %vm478, %v489
        $region52: #{tpu_custom_call.1} parent=47 // pred_fallthru
          _
        // Predicated region
        $region53: #{tpu_custom_call.1} parent=47 // pred_check
          %p491 = pneg %p386
        $region54: #{tpu_custom_call.1} parent=47 // pred_check_branch
          %493 = sbr.rel (%p491) target = $region56
        $region55: #{tpu_custom_call.1} parent=47 // pred_region
          %v494 = vlaneseq
          %v495 = vand.u32 %v494, 127
          %v496 = vstv %s27
          %vm497 = vcmp.eq.s32.totalorder %v495, %v496
          %v498 = vld [vmem:[#allocation3] sm:$0xff]
          %v499 = vsel %vm497, %v498, 0.0
          %vm500 = vcmask 23552
          %v501 = vsel %vm500, %v499, 0.0
          %502 = vadd.xlane.f32.xlu0 %v501
          %v503 = vpop.xlane.xlu0 %502
          %vm504 = vcmask 7168
          %505 = vst.msk [vmem:[#allocation4] sm:$0xff] %vm504, %v503
        $region56: #{tpu_custom_call.1} parent=47 // pred_fallthru
          _
        %v506 = vld [vmem:[%s360] sm:$0xff]
        %v507 = vld [vmem:[%s368] sm:$0xff]
        %v508 = vld [vmem:[%s368 + $0x8] sm:$0xff]
        %v509 = vld [vmem:[%s368 + $0x10] sm:$0xff]
        %v510 = vld [vmem:[%s368 + $0x18] sm:$0xff]
        %v511 = vld [vmem:[%s374] sm:$0x1]
        %v513 = vlaneseq
        %v514 = vshrl.u32 %v513, 7
        %v515 = vsub.s32 0, %v514
        %v516 = vrot.slane %v511, %v515
        %vm518 = vcmask 261120
        %v520 = vsel %vm518, %v506, 0
        %522 = vmatprep.subr.mxu0 0.0
        %523 = vmatpush1.msra.mxu0 %v507
        %524 = vmatprep.subr.mxu0 0.0
        %525 = vmatpush1.msra.mxu0 %v508
        %526 = vmatprep.subr.mxu0 0.0
        %527 = vmatpush1.msra.mxu0 %v509
        %528 = vmatprep.subr.mxu0 0.0
        %529 = vmatpush1.msra.mxu0 %v510
        %530 = vmatprep.subr.mxu0 0.0
        %531 = vmatpush1.msra.mxu0 0.0
        %532 = vmatprep.subr.mxu0 0.0
        %533 = vmatpush1.msra.mxu0 0.0
        %534 = vmatprep.subr.mxu0 0.0
        %535 = vmatpush1.msra.mxu0 0.0
        %536 = vmatprep.subr.mxu0 0.0
        %537 = vmatpush1.msra.mxu0 0.0
        %538 = vmatprep.subr.mxu0 0.0
        %539 = vmatpush1.msra.mxu0 0.0
        %540 = vmatprep.subr.mxu0 0.0
        %541 = vmatpush1.msra.mxu0 0.0
        %542 = vmatprep.subr.mxu0 0.0
        %543 = vmatpush1.msra.mxu0 0.0
        %544 = vmatprep.subr.mxu0 0.0
        %545 = vmatpush1.msra.mxu0 0.0
        %546 = vmatprep.subr.mxu0 0.0
        %547 = vmatpush1.msra.mxu0 0.0
        %548 = vmatprep.subr.mxu0 0.0
        %549 = vmatpush1.msra.mxu0 0.0
        %550 = vmatprep.subr.mxu0 0.0
        %551 = vmatpush1.msra.mxu0 0.0
        %552 = vmatprep.subr.mxu0 0.0
        %553 = vmatpush1.msra.mxu0 0.0
        %554 = vmatprep.subr.mxu0 0.0
        %555 = vmatpush1.msra.mxu0 0.0
        %556 = vmatprep.subr.mxu0 0.0
        %557 = vmatpush1.msra.mxu0 0.0
        %558 = vmatprep.subr.mxu0 0.0
        %559 = vmatpush1.msra.mxu0 0.0
        %560 = vmatprep.subr.mxu0 0.0
        %561 = vmatpush1.msra.mxu0 0.0
        %562 = vmatprep.subr.mxu0 0.0
        %563 = vmatpush1.msra.mxu0 0.0
        %564 = vmatprep.subr.mxu0 0.0
        %565 = vmatpush1.msra.mxu0 0.0
        %566 = vmatprep.subr.mxu0 0.0
        %567 = vmatpush1.msra.mxu0 0.0
        %568 = vmatprep.subr.mxu0 0.0
        %569 = vmatpush1.msra.mxu0 0.0
        %570 = vmatprep.subr.mxu0 0.0
        %571 = vmatpush1.msra.mxu0 0.0
        %572 = vmatprep.subr.mxu0 0.0
        %573 = vmatpush1.msra.mxu0 0.0
        %574 = vmatprep.subr.mxu0 0.0
        %575 = vmatpush1.msra.mxu0 0.0
        %576 = vmatprep.subr.mxu0 0.0
        %577 = vmatpush1.msra.mxu0 0.0
        %578 = vmatprep.subr.mxu0 0.0
        %579 = vmatpush1.msra.mxu0 0.0
        %580 = vmatprep.subr.mxu0 0.0
        %581 = vmatpush1.msra.mxu0 0.0
        %582 = vmatprep.subr.mxu0 0.0
        %583 = vmatpush1.msra.mxu0 0.0
        %584 = vmatprep.subr.mxu0 0.0
        %585 = vmatpush1.msra.mxu0 0.0
        %586 = vmatprep.mubr.f32.mxu0 0.0
        %587 = vmatmul.mubr.f32.gmra.mrb[0].mxu0 %v520
        %v588 = vpop.f32.mrb[0].mxu0
        %v589 = vadd.f32 %v516, %v588
        %v590 = vpop.f32.mrb[0].mxu0
        %591 = vdwg.mxu0
        %v592 = vmax.f32 %v589, 0.0
        %v593 = vld [vmem:[#allocation4] sm:$0xff]
        %595 = vset.pattern.permute.xlu0 0
        %596 = vperm.xlu0 %595, %v593
        %v597 = vpop.permute.xlu0 %596
        %v599 = vmul.f32 %v597, %v592
        %v600 = vld [vmem:[#allocation2] sm:$0xff]
        %v601 = vld [vmem:[%s383] sm:$0xff]
        %v602 = vld [vmem:[%s383 + $0x8] sm:$0xff]
        %v603 = vld [vmem:[%s383 + $0x10] sm:$0xff]
        %v604 = vld [vmem:[%s383 + $0x18] sm:$0xff]
        %v605 = vld [vmem:[%s383 + $0x20] sm:$0xff]
        %v606 = vld [vmem:[%s383 + $0x28] sm:$0xff]
        %v607 = vld [vmem:[%s383 + $0x30] sm:$0xff]
        %v608 = vld [vmem:[%s383 + $0x38] sm:$0xff]
        %vm609 = vcmask 523264
        %v611 = vsel %vm609, %v599, 0
        %613 = vmatprep.subr.mxu0 0.0
        %614 = vmatpush1.msra.mxu0 %v601
        %615 = vmatprep.subr.mxu0 0.0
        %616 = vmatpush1.msra.mxu0 %v602
        %617 = vmatprep.subr.mxu0 0.0
        %618 = vmatpush1.msra.mxu0 %v603
        %619 = vmatprep.subr.mxu0 0.0
        %620 = vmatpush1.msra.mxu0 %v604
        %621 = vmatprep.subr.mxu0 0.0
        %622 = vmatpush1.msra.mxu0 %v605
        %623 = vmatprep.subr.mxu0 0.0
        %624 = vmatpush1.msra.mxu0 %v606
        %625 = vmatprep.subr.mxu0 0.0
        %626 = vmatpush1.msra.mxu0 %v607
        %627 = vmatprep.subr.mxu0 0.0
        %628 = vmatpush1.msra.mxu0 %v608
        %629 = vmatprep.subr.mxu0 0.0
        %630 = vmatpush1.msra.mxu0 0.0
        %631 = vmatprep.subr.mxu0 0.0
        %632 = vmatpush1.msra.mxu0 0.0
        %633 = vmatprep.subr.mxu0 0.0
        %634 = vmatpush1.msra.mxu0 0.0
        %635 = vmatprep.subr.mxu0 0.0
        %636 = vmatpush1.msra.mxu0 0.0
        %637 = vmatprep.subr.mxu0 0.0
        %638 = vmatpush1.msra.mxu0 0.0
        %639 = vmatprep.subr.mxu0 0.0
        %640 = vmatpush1.msra.mxu0 0.0
        %641 = vmatprep.subr.mxu0 0.0
        %642 = vmatpush1.msra.mxu0 0.0
        %643 = vmatprep.subr.mxu0 0.0
        %644 = vmatpush1.msra.mxu0 0.0
        %645 = vmatprep.subr.mxu0 0.0
        %646 = vmatpush1.msra.mxu0 0.0
        %647 = vmatprep.subr.mxu0 0.0
        %648 = vmatpush1.msra.mxu0 0.0
        %649 = vmatprep.subr.mxu0 0.0
        %650 = vmatpush1.msra.mxu0 0.0
        %651 = vmatprep.subr.mxu0 0.0
        %652 = vmatpush1.msra.mxu0 0.0
        %653 = vmatprep.subr.mxu0 0.0
        %654 = vmatpush1.msra.mxu0 0.0
        %655 = vmatprep.subr.mxu0 0.0
        %656 = vmatpush1.msra.mxu0 0.0
        %657 = vmatprep.subr.mxu0 0.0
        %658 = vmatpush1.msra.mxu0 0.0
        %659 = vmatprep.subr.mxu0 0.0
        %660 = vmatpush1.msra.mxu0 0.0
        %661 = vmatprep.subr.mxu0 0.0
        %662 = vmatpush1.msra.mxu0 0.0
        %663 = vmatprep.subr.mxu0 0.0
        %664 = vmatpush1.msra.mxu0 0.0
        %665 = vmatprep.subr.mxu0 0.0
        %666 = vmatpush1.msra.mxu0 0.0
        %667 = vmatprep.subr.mxu0 0.0
        %668 = vmatpush1.msra.mxu0 0.0
        %669 = vmatprep.subr.mxu0 0.0
        %670 = vmatpush1.msra.mxu0 0.0
        %671 = vmatprep.subr.mxu0 0.0
        %672 = vmatpush1.msra.mxu0 0.0
        %673 = vmatprep.subr.mxu0 0.0
        %674 = vmatpush1.msra.mxu0 0.0
        %675 = vmatprep.subr.mxu0 0.0
        %676 = vmatpush1.msra.mxu0 0.0
        %677 = vmatprep.mubr.f32.mxu0 0.0
        %678 = vmatmul.mubr.f32.gmra.mrb[0].mxu0 %v611
        %v679 = vpop.f32.mrb[0].mxu0
        %v680 = vadd.f32 0.0, %v679
        %v681 = vpop.f32.mrb[0].mxu0
        %682 = vdwg.mxu0
        %v683 = vadd.f32 %v600, %v680
        %684 = vst.msk [vmem:[#allocation2] sm:$0xff] %vm518, %v683
        %p685 = scmp.eq.s32.totalorder %s27, 2
        %p686 = pnand %p685, %p386
        %p687 = pneg %p686
        // Predicated region
        $region57: #{tpu_custom_call.1} parent=47 // pred_check
          _
        $region58: #{tpu_custom_call.1} parent=47 // pred_check_branch
          %689 = sbr.rel (%p686) target = $region60
        $region59: #{tpu_custom_call.1} parent=47 // pred_region
          %v690 = vld [vmem:[#allocation2] sm:$0xff]
          %v691 = vld [vmem:[#allocation3] sm:$0xff]
          %v692 = vld [vmem:[%s6] sm:$0x7]
          %vm693 = vcmask 23552
          %v695 = vsel %vm693, %v691, 0
          %vm697 = vcmask 1042432
          %v699 = vsel %vm697, %v692, 0
          %701 = vmatprep.subr.mxu0 0.0
          %702 = vmatpush1.msra.mxu0 %v699
          %703 = vmatprep.subr.mxu0 0.0
          %704 = vmatpush1.msra.mxu0 0.0
          %705 = vmatprep.subr.mxu0 0.0
          %706 = vmatpush1.msra.mxu0 0.0
          %707 = vmatprep.subr.mxu0 0.0
          %708 = vmatpush1.msra.mxu0 0.0
          %709 = vmatprep.subr.mxu0 0.0
          %710 = vmatpush1.msra.mxu0 0.0
          %711 = vmatprep.subr.mxu0 0.0
          %712 = vmatpush1.msra.mxu0 0.0
          %713 = vmatprep.subr.mxu0 0.0
          %714 = vmatpush1.msra.mxu0 0.0
          %715 = vmatprep.subr.mxu0 0.0
          %716 = vmatpush1.msra.mxu0 0.0
          %717 = vmatprep.subr.mxu0 0.0
          %718 = vmatpush1.msra.mxu0 0.0
          %719 = vmatprep.subr.mxu0 0.0
          %720 = vmatpush1.msra.mxu0 0.0
          %721 = vmatprep.subr.mxu0 0.0
          %722 = vmatpush1.msra.mxu0 0.0
          %723 = vmatprep.subr.mxu0 0.0
          %724 = vmatpush1.msra.mxu0 0.0
          %725 = vmatprep.subr.mxu0 0.0
          %726 = vmatpush1.msra.mxu0 0.0
          %727 = vmatprep.subr.mxu0 0.0
          %728 = vmatpush1.msra.mxu0 0.0
          %729 = vmatprep.subr.mxu0 0.0
          %730 = vmatpush1.msra.mxu0 0.0
          %731 = vmatprep.subr.mxu0 0.0
          %732 = vmatpush1.msra.mxu0 0.0
          %733 = vmatprep.subr.mxu0 0.0
          %734 = vmatpush1.msra.mxu0 0.0
          %735 = vmatprep.subr.mxu0 0.0
          %736 = vmatpush1.msra.mxu0 0.0
          %737 = vmatprep.subr.mxu0 0.0
          %738 = vmatpush1.msra.mxu0 0.0
          %739 = vmatprep.subr.mxu0 0.0
          %740 = vmatpush1.msra.mxu0 0.0
          %741 = vmatprep.subr.mxu0 0.0
          %742 = vmatpush1.msra.mxu0 0.0
          %743 = vmatprep.subr.mxu0 0.0
          %744 = vmatpush1.msra.mxu0 0.0
          %745 = vmatprep.subr.mxu0 0.0
          %746 = vmatpush1.msra.mxu0 0.0
          %747 = vmatprep.subr.mxu0 0.0
          %748 = vmatpush1.msra.mxu0 0.0
          %749 = vmatprep.subr.mxu0 0.0
          %750 = vmatpush1.msra.mxu0 0.0
          %751 = vmatprep.subr.mxu0 0.0
          %752 = vmatpush1.msra.mxu0 0.0
          %753 = vmatprep.subr.mxu0 0.0
          %754 = vmatpush1.msra.mxu0 0.0
          %755 = vmatprep.subr.mxu0 0.0
          %756 = vmatpush1.msra.mxu0 0.0
          %757 = vmatprep.subr.mxu0 0.0
          %758 = vmatpush1.msra.mxu0 0.0
          %759 = vmatprep.subr.mxu0 0.0
          %760 = vmatpush1.msra.mxu0 0.0
          %761 = vmatprep.subr.mxu0 0.0
          %762 = vmatpush1.msra.mxu0 0.0
          %763 = vmatprep.subr.mxu0 0.0
          %764 = vmatpush1.msra.mxu0 0.0
          %765 = vmatprep.mubr.f32.mxu0 0.0
          %766 = vmatmul.mubr.f32.gmra.mrb[0].mxu0 %v695
          %v767 = vpop.f32.mrb[0].mxu0
          %v768 = vadd.f32 0.0, %v767
          %v769 = vpop.f32.mrb[0].mxu0
          %770 = vdwg.mxu0
          %v771 = vadd.f32 %v690, %v768
          %772 = vst.msk [vmem:[#allocation2] sm:$0xff] %vm518, %v771
          %v773 = vld [vmem:[#allocation2] sm:$0xff]
          %774 = vst.msk [vmem:[%s356] sm:$0xff] %vm518, %v773
        $region60: #{tpu_custom_call.1} parent=47 // pred_fallthru
          _
        %s775 = sand.u32 %s221, 1
        %s776 = scalar_lea.sflag [#allocation6], %s775
        %s777 = sand.u32 %s221, 1
        %s778 = smul.addr %s777, 8
        %s779 = scalar_lea.vmem [#allocation5], %s778
        // Predicated region
        $region61: #{tpu_custom_call.1} parent=47 // pred_check
          %p780 = pneg %p231
        $region62: #{tpu_custom_call.1} parent=47 // pred_check_branch
          %782 = sbr.rel (%p780) target = $region64
        $region63: #{tpu_custom_call.1} parent=47 // pred_region
          %s784 = ssub.s32 128, 128
          %785 = vsyncadd %s776, %s784
          %s786 = smul.addr %s26, 128
          %s787 = scalar_lea.hbm %s7, %s786
          %s789 = sshll.u32 %s779, 4
          %s790 = int_to_ptr.vmem [resolvable:$true] %s789
          %792 = dma.vmem_to_hbm [thread:$0]  %s790, 128, %s787, %s776
        $region64: #{tpu_custom_call.1} parent=47 // pred_fallthru
          _
      $region48: #{tpu_custom_call.1} parent=5 // pred_fallthru
        _
      %p793 = scmp.le.s32.totalorder 2, %s16
      // Predicated region
      $region65: #{tpu_custom_call.1} parent=5 // pred_check
        %p794 = pneg %p793
      $region66: #{tpu_custom_call.1} parent=5 // pred_check_branch
        %796 = sbr.rel (%p794) target = $region68
      $region67: #{tpu_custom_call.1} parent=5 // pred_region
        %s797 = ssub.s32 %s16, 2
        // Predicated region
        $region69: #{tpu_custom_call.1} parent=67 // pred_check
          %p798 = pneg %p237
        $region70: #{tpu_custom_call.1} parent=67 // pred_check_branch
          %800 = sbr.rel (%p798) target = $region72
        $region71: #{tpu_custom_call.1} parent=67 // pred_region
          %s801 = sand.u32 %s222, 1
          %s802 = scalar_lea.sflag [#allocation6], %s801
          %s803 = sand.u32 %s222, 1
          %s804 = smul.addr %s803, 8
          %s805 = scalar_lea.vmem [#allocation5], %s804
          %806 = dma.done %s802, 128
        $region72: #{tpu_custom_call.1} parent=67 // pred_fallthru
          _
      $region68: #{tpu_custom_call.1} parent=5 // pred_fallthru
        _
    $region6: #{tpu_custom_call.1} parent=1 // loop_footer
      %s20 = sadd.s32 1, %s16
    $region7: #{tpu_custom_call.1} parent=1 // loop_footer_branch
      %15 = sbr.rel target = $region3
    $region8: #{tpu_custom_call.1} parent=1 // loop_exit
      _
    %807 = vsyncpa [#allocation6], 1
    %s808 = scalar_lea.sflag [#allocation6], 1
    %809 = vsyncpa %s808, 1

</llo_original>
